<compile_context>
chip_gen: v6e
topology: v6e:2x2x1
jax: 0.10.0
libtpu: 0.0.40
codegen_flags: <defaults>
</compile_context>

<pallas_src>
import functools

import jax
import jax.numpy as jnp
import numpy as np
from jax.experimental import pallas as pl
from jax.experimental.pallas import tpu as pltpu


def _round_up(x, m):
    return ((x + m - 1) // m) * m


def _disc_kernel(x_ref, w1_ref, b1_ref, w2_ref, b2_ref, wl_ref, s_ref,
                 o_ref, acc_ref, *, inv_n, n_real, tile_n, need_mask):
    """One (graph-block b, node-tile k) grid step.

    x_ref  : (1, gB, tN, D) f32   node-feature tile of gB graphs
    w1_ref : (D, Hp)  bf16,  b1_ref: (1, Hp) f32   -- encoder Linear 1
    w2_ref : (Hp, Hp) f32,   b2_ref: (1, Hp) f32   -- encoder Linear 2 (hoisted past the pool)
    wl_ref : (1, Hp)  f32    -- self.linear weight row (H -> 1)
    s_ref  : (3,) f32 SMEM   -- [a1 (encoder PReLU), a2 (self.prelu), bl (linear bias)]
    o_ref  : (1, gB, 128) f32 lane-dense per-graph output (scalar broadcast on lanes)
    acc_ref: (gB, Hp) f32 VMEM per-graph pooled h1-sum accumulator
    """
    k = pl.program_id(1)

    @pl.when(k == 0)
    def _init():
        acc_ref[...] = jnp.zeros_like(acc_ref)

    gB = x_ref.shape[1]
    tN = x_ref.shape[2]
    Hp = w1_ref.shape[1]

    a1 = s_ref[0]
    x = x_ref[0].reshape(gB * tN, x_ref.shape[3]).astype(jnp.bfloat16)   # (gB*tN, D)

    # encoder: Linear(in,H) -> PReLU -> Dropout(0.2, eval identity); Linear(H,H) deferred.
    h1 = jnp.dot(x, w1_ref[...], preferred_element_type=jnp.float32) + b1_ref[...]
    h1 = jnp.where(h1 > 0, h1, a1 * h1)                                  # PReLU (f32 VPU)
    h1 = h1.reshape(gB, tN, Hp)

    if need_mask:
        # zero padded node rows (x was zero-padded along N; b1 + PReLU make them nonzero)
        node_idx = k * tile_n + jax.lax.broadcasted_iota(jnp.int32, (gB, tN, Hp), 1)
        h1 = jnp.where(node_idx < n_real, h1, 0.0)

    # dgl.mean_nodes: accumulate per-graph node sums (sublane reduce, XLU slot)
    acc_ref[...] += jnp.sum(h1, axis=1)                                  # (gB, Hp)

    @pl.when(k == pl.num_programs(1) - 1)
    def _finalize():
        a2 = s_ref[1]
        bl = s_ref[2]
        m = acc_ref[...] * inv_n                                         # mean over nodes
        # encoder Linear-2 hoisted past the (linear) mean pool; runs once per graph block, f32.
        m = jnp.dot(m, w2_ref[...], preferred_element_type=jnp.float32) + b2_ref[...]
        m = jnp.where(m > 0, m, a2 * m)                                  # self.prelu
        # self.linear (H -> 1) as VPU multiply + lane reduce (no 1-column MXU matmul)
        y = jnp.sum(m * wl_ref[...], axis=-1, keepdims=True) + bl        # (gB, 1)
        o_ref[0] = jnp.broadcast_to(jax.nn.sigmoid(y), o_ref.shape[1:])  # lane-dense store


def discrimator_forward(x_bnd, params, *, node_tile_cap=2048, graph_block_cap=8,
                        m_rows_cap=8192):
    """x_bnd: (B, N, D) -- B equal-size graphs, N nodes each, D = in_dim."""
    B, N, D = x_bnd.shape
    H = params["w1"].shape[1]
    Hp = _round_up(H, 128)

    # Graph block: largest divisor of B not exceeding graph_block_cap (fattens the MXU M dim
    # and cuts grid steps; also helps v7x 2-TC balance for small B).
    gB = 1
    for t in range(min(B, graph_block_cap), 0, -1):
        if B % t == 0:
            gB = t
            break
    nb = B // gB

    # Fixed node tile (multiple of 8), independent of N's factorization; pad N up to it and
    # mask padded rows in-kernel.  Keep gB*tN bounded so the f32 intermediate stays small.
    tN = min(_round_up(N, 8), _round_up(node_tile_cap, 8))
    while gB * tN > m_rows_cap and tN > 8:
        tN = max(8, _round_up(tN // 2, 8))
    Npad = _round_up(N, tN)
    nk = Npad // tN
    need_mask = Npad != N

    # x streams straight from HBM in f32 (no lane padding / dtype copy); bf16 cast is in-kernel.
    x = x_bnd.astype(jnp.float32)
    if need_mask:
        x = jnp.pad(x, ((0, 0), (0, Npad - N), (0, 0)))
    x = x.reshape(nb, gB, Npad, D)

    # Lane-dense (128) H padding on the tiny weights only.  w1 bf16 (MXU), w2 f32 (finalize).
    w1 = jnp.zeros((D, Hp), jnp.bfloat16).at[:, :H].set(params["w1"].astype(jnp.bfloat16))
    w2 = jnp.zeros((Hp, Hp), jnp.float32).at[:H, :H].set(params["w2"].astype(jnp.float32))
    b1 = jnp.zeros((1, Hp), jnp.float32).at[:, :H].set(params["b1"])
    b2 = jnp.zeros((1, Hp), jnp.float32).at[:, :H].set(params["b2"])
    wl = jnp.zeros((1, Hp), jnp.float32).at[:, :H].set(params["wl"].reshape(1, H))
    scalars = jnp.concatenate([params["a1"].reshape(1),
                               params["a2"].reshape(1),
                               params["bl"].reshape(1)]).astype(jnp.float32)

    const2d = lambda shp: pl.BlockSpec(shp, lambda b, k: (0, 0))
    smem = pl.BlockSpec(memory_space=pltpu.MemorySpace.SMEM)

    # VMEM budget: double-buffered x tile, in-kernel bf16 x copy + f32 h1 intermediate,
    # double-buffered (small) weights, accumulator, double-buffered output.  Headroom-capped
    # below v7x's 64 MiB physical VMEM.
    vmem_est = (2 * gB * tN * D * 4              # x tile (f32), double-buffered
                + gB * tN * D * 2                # bf16 cast of x
                + gB * tN * Hp * 4               # h1 f32 intermediate
                + 2 * (D * Hp * 2 + Hp * Hp * 4 + 3 * Hp * 4)   # weights, double-buffered
                + gB * Hp * 4                    # accumulator scratch
                + 2 * gB * 128 * 4)              # output block, double-buffered
    vmem_limit = int(min(max(2 * vmem_est, 16 << 20), 40 << 20))

    kernel = functools.partial(_disc_kernel, inv_n=1.0 / float(N), n_real=N,
                               tile_n=tN, need_mask=need_mask)

    out = pl.pallas_call(
        kernel,
        out_shape=jax.ShapeDtypeStruct((nb, gB, 128), jnp.float32),
        grid_spec=pltpu.PrefetchScalarGridSpec(
            num_scalar_prefetch=0,
            grid=(nb, nk),                                              # graph blocks x node tiles
            in_specs=[
                pl.BlockSpec((1, gB, tN, D), lambda b, k: (b, 0, k, 0)),  # x: tiled over nodes
                const2d((D, Hp)),                                       # w1 (VMEM-resident)
                const2d((1, Hp)),                                       # b1
                const2d((Hp, Hp)),                                      # w2 (finalize only)
                const2d((1, Hp)),                                       # b2
                const2d((1, Hp)),                                       # wl row
                smem,                                                   # [a1, a2, bl] scalars
            ],
            out_specs=pl.BlockSpec((1, gB, 128), lambda b, k: (b, 0, 0)),
            scratch_shapes=[pltpu.VMEM((gB, Hp), jnp.float32)],          # per-graph pooled sum
        ),
        compiler_params=pltpu.CompilerParams(
            dimension_semantics=("parallel", "arbitrary"),               # graph blocks ||, nodes = reduction
            vmem_limit_bytes=vmem_limit,
        ),
    )(x, w1, b1, w2, b2, wl, scalars)

    return out.reshape(B, 128)[:, :1]                                    # (B, 1)


def ref_forward(x_bnd, params):
    """Pure-JAX f32 reference matching the PyTorch forward (eval mode)."""
    B, N, D = x_bnd.shape
    x = x_bnd.reshape(B * N, D)
    a1 = params["a1"][0]
    a2 = params["a2"][0]
    h = x @ params["w1"] + params["b1"]
    h = jnp.where(h > 0, h, a1 * h)
    h = h @ params["w2"] + params["b2"]
    m = h.reshape(B, N, -1).mean(axis=1)
    m = jnp.where(m > 0, m, a2 * m)
    y = m @ params["wl"] + params["bl"]
    return jax.nn.sigmoid(y)


def init_params(key, in_dim, num_hidden):
    ks = jax.random.split(key, 6)

    def lin(kw, kb, fan_in, fan_out):
        bound = 1.0 / np.sqrt(fan_in)
        w = jax.random.uniform(kw, (fan_in, fan_out), jnp.float32, -bound, bound)
        b = jax.random.uniform(kb, (1, fan_out), jnp.float32, -bound, bound)
        return w, b

    w1, b1 = lin(ks[0], ks[1], in_dim, num_hidden)      # encoder Linear(in_dim, H)
    w2, b2 = lin(ks[2], ks[3], num_hidden, num_hidden)  # encoder Linear(H, H)
    wl, bl = lin(ks[4], ks[5], num_hidden, 1)           # self.linear: Linear(H, 1)
    return {
        "w1": w1, "b1": b1,
        "w2": w2, "b2": b2,
        "wl": wl, "bl": bl,
        "a1": jnp.full((1,), 0.25, jnp.float32),        # nn.PReLU() default init
        "a2": jnp.full((1,), 0.25, jnp.float32),
    }


if __name__ == "__main__":
    key = jax.random.PRNGKey(0)
    kx1, kx2, kp = jax.random.split(key, 3)
    in_dim, num_hidden = 16, 32
    params = init_params(kp, in_dim, num_hidden)

    # Case 1: 2 graphs x 8 nodes (no node padding / masking needed).
    x1 = jax.random.normal(kx1, (2, 8, in_dim), dtype=jnp.float32)
    out1 = jax.block_until_ready(discrimator_forward(x1, params))
    ref1 = jax.block_until_ready(ref_forward(x1, params))
    assert out1.shape == (2, 1)
    assert np.allclose(np.asarray(out1), np.asarray(ref1), rtol=2e-2, atol=2e-2), (out1, ref1)

    # Case 2: 2 graphs x 10 nodes (exercises padded-node masking path).
    x2 = jax.random.normal(kx2, (2, 10, in_dim), dtype=jnp.float32)
    out2 = jax.block_until_ready(discrimator_forward(x2, params))
    ref2 = jax.block_until_ready(ref_forward(x2, params))
    assert out2.shape == (2, 1)
    assert np.allclose(np.asarray(out2), np.asarray(ref2), rtol=2e-2, atol=2e-2), (out2, ref2)

    print("KERNEL_OK")
</pallas_src>

<mosaic_0001>
module attributes {stable_mosaic.version = 11 : i64} {
  func.func @_disc_kernel(%arg0: i32, %arg1: i32, %arg2: memref<1x2x8x16xf32, #tpu.memory_space<vmem>>, %arg3: memref<16x128xbf16, #tpu.memory_space<vmem>>, %arg4: memref<1x128xf32, #tpu.memory_space<vmem>>, %arg5: memref<128x128xf32, #tpu.memory_space<vmem>>, %arg6: memref<1x128xf32, #tpu.memory_space<vmem>>, %arg7: memref<1x128xf32, #tpu.memory_space<vmem>>, %arg8: memref<3xf32, #tpu.memory_space<smem>>, %arg9: memref<1x2x128xf32, #tpu.memory_space<vmem>>, %arg10: memref<2x128xf32, #tpu.memory_space<vmem>>) attributes {dimension_semantics = [#tpu.dimension_semantics<parallel>, #tpu.dimension_semantics<arbitrary>], iteration_bounds = array<i64: 1, 1>, scalar_prefetch = 0 : i64, scratch_operands = 1 : i64, tpu.core_type = #tpu.core_type<tc>, window_params = [{transform_indices = @transform_0, window_bounds = array<i64: 1, 2, 8, 16>}, {pipeline_mode = #tpu.pipeline_mode<synchronous>, transform_indices = @transform_1, window_bounds = array<i64: 16, 128>}, {pipeline_mode = #tpu.pipeline_mode<synchronous>, transform_indices = @transform_2, window_bounds = array<i64: 1, 128>}, {pipeline_mode = #tpu.pipeline_mode<synchronous>, transform_indices = @transform_3, window_bounds = array<i64: 128, 128>}, {pipeline_mode = #tpu.pipeline_mode<synchronous>, transform_indices = @transform_4, window_bounds = array<i64: 1, 128>}, {pipeline_mode = #tpu.pipeline_mode<synchronous>, transform_indices = @transform_5, window_bounds = array<i64: 1, 128>}, {transform_indices = @transform_6, window_bounds = array<i64: 3>}, {transform_indices = @transform_7, window_bounds = array<i64: 1, 2, 128>}]} {
    %c0_i32 = arith.constant 0 : i32
    %0 = arith.cmpi eq, %arg1, %c0_i32 : i32
    %1 = arith.extui %0 : i1 to i32
    %c0_i32_0 = arith.constant 0 : i32
    %2 = arith.cmpi ne, %1, %c0_i32_0 : i32
    scf.if %2 {
      %cst_17 = arith.constant 0.000000e+00 : f32
      %26 = vector.broadcast %cst_17 : f32 to vector<2x128xf32>
      %c0_18 = arith.constant 0 : index
      %c0_19 = arith.constant 0 : index
      %27 = vector.load %arg10[%c0_18, %c0_19] : memref<2x128xf32, #tpu.memory_space<vmem>>, vector<2x128xf32>
      tpu.vector_store %arg10[%c0_18, %c0_19], %26 {strides = array<i32>} : memref<2x128xf32, #tpu.memory_space<vmem>>, vector<2x128xf32>,
    } else {
    }
    %c0 = arith.constant 0 : index
    %3 = memref.load %arg8[%c0] : memref<3xf32, #tpu.memory_space<smem>>
    %c0_1 = arith.constant 0 : index
    %c0_2 = arith.constant 0 : index
    %c0_3 = arith.constant 0 : index
    %c0_4 = arith.constant 0 : index
    %4 = vector.load %arg2[%c0_1, %c0_2, %c0_3, %c0_4] : memref<1x2x8x16xf32, #tpu.memory_space<vmem>>, vector<1x2x8x16xf32>
    %5 = vector.shape_cast %4 : vector<1x2x8x16xf32> to vector<2x8x16xf32>
    %6 = vector.shape_cast %5 : vector<2x8x16xf32> to vector<16x16xf32>
    %7 = arith.truncf %6 : vector<16x16xf32> to vector<16x16xbf16>
    %c0_5 = arith.constant 0 : index
    %c0_6 = arith.constant 0 : index
    %8 = vector.load %arg3[%c0_5, %c0_6] : memref<16x128xbf16, #tpu.memory_space<vmem>>, vector<16x128xbf16>
    %cst = arith.constant dense<0.000000e+00> : vector<16x128xf32>
    %9 = tpu.matmul %7, %8, %cst {dimension_numbers = #tpu.dot_dimension_numbers<[1], [0], [0], [1], [0, 0, 1, 1], [], []>} : vector<16x16xbf16>, vector<16x128xbf16>, vector<16x128xf32> -> vector<16x128xf32>
    %c0_7 = arith.constant 0 : index
    %c0_8 = arith.constant 0 : index
    %10 = vector.load %arg4[%c0_7, %c0_8] : memref<1x128xf32, #tpu.memory_space<vmem>>, vector<1x128xf32>
    %11 = vector.broadcast %10 : vector<1x128xf32> to vector<16x128xf32>
    %12 = arith.addf %9, %11 : vector<16x128xf32>
    %cst_9 = arith.constant 0.000000e+00 : f32
    %13 = vector.broadcast %cst_9 : f32 to vector<16x128xf32>
    %14 = arith.cmpf ogt, %12, %13 : vector<16x128xf32>
    %15 = vector.broadcast %3 : f32 to vector<16x128xf32>
    %16 = arith.mulf %15, %12 : vector<16x128xf32>
    %17 = arith.select %14, %12, %16 : vector<16x128xi1>, vector<16x128xf32>
    %18 = vector.shape_cast %17 : vector<16x128xf32> to vector<2x8x128xf32>
    %c0_10 = arith.constant 0 : index
    %c0_11 = arith.constant 0 : index
    %19 = vector.load %arg10[%c0_10, %c0_11] : memref<2x128xf32, #tpu.memory_space<vmem>>, vector<2x128xf32>
    %cst_12 = arith.constant dense<0.000000e+00> : vector<2x128xf32>
    %20 = vector.multi_reduction <add>, %18, %cst_12 [1] : vector<2x8x128xf32> to vector<2x128xf32>
    %21 = arith.addf %19, %20 : vector<2x128xf32>
    %c0_13 = arith.constant 0 : index
    %c0_14 = arith.constant 0 : index
    %22 = vector.load %arg10[%c0_13, %c0_14] : memref<2x128xf32, #tpu.memory_space<vmem>>, vector<2x128xf32>
    tpu.vector_store %arg10[%c0_13, %c0_14], %21 {strides = array<i32>} : memref<2x128xf32, #tpu.memory_space<vmem>>, vector<2x128xf32>,
    %c0_i32_15 = arith.constant 0 : i32
    %23 = arith.cmpi eq, %arg1, %c0_i32_15 : i32
    %24 = arith.extui %23 : i1 to i32
    %c0_i32_16 = arith.constant 0 : i32
    %25 = arith.cmpi ne, %24, %c0_i32_16 : i32
    scf.if %25 {
      %c1 = arith.constant 1 : index
      %26 = memref.load %arg8[%c1] : memref<3xf32, #tpu.memory_space<smem>>
      %c2 = arith.constant 2 : index
      %27 = memref.load %arg8[%c2] : memref<3xf32, #tpu.memory_space<smem>>
      %c0_17 = arith.constant 0 : index
      %c0_18 = arith.constant 0 : index
      %28 = vector.load %arg10[%c0_17, %c0_18] : memref<2x128xf32, #tpu.memory_space<vmem>>, vector<2x128xf32>
      %cst_19 = arith.constant 1.250000e-01 : f32
      %29 = vector.broadcast %cst_19 : f32 to vector<2x128xf32>
      %30 = arith.mulf %28, %29 : vector<2x128xf32>
      %c0_20 = arith.constant 0 : index
      %c0_21 = arith.constant 0 : index
      %31 = vector.load %arg5[%c0_20, %c0_21] : memref<128x128xf32, #tpu.memory_space<vmem>>, vector<128x128xf32>
      %cst_22 = arith.constant dense<0.000000e+00> : vector<2x128xf32>
      %32 = tpu.matmul %30, %31, %cst_22 {dimension_numbers = #tpu.dot_dimension_numbers<[1], [0], [0], [1], [0, 0, 1, 1], [], []>} : vector<2x128xf32>, vector<128x128xf32>, vector<2x128xf32> -> vector<2x128xf32>
      %c0_23 = arith.constant 0 : index
      %c0_24 = arith.constant 0 : index
      %33 = vector.load %arg6[%c0_23, %c0_24] : memref<1x128xf32, #tpu.memory_space<vmem>>, vector<1x128xf32>
      %34 = vector.broadcast %33 : vector<1x128xf32> to vector<2x128xf32>
      %35 = arith.addf %32, %34 : vector<2x128xf32>
      %cst_25 = arith.constant 0.000000e+00 : f32
      %36 = vector.broadcast %cst_25 : f32 to vector<2x128xf32>
      %37 = arith.cmpf ogt, %35, %36 : vector<2x128xf32>
      %38 = vector.broadcast %26 : f32 to vector<2x128xf32>
      %39 = arith.mulf %38, %35 : vector<2x128xf32>
      %40 = arith.select %37, %35, %39 : vector<2x128xi1>, vector<2x128xf32>
      %c0_26 = arith.constant 0 : index
      %c0_27 = arith.constant 0 : index
      %41 = vector.load %arg7[%c0_26, %c0_27] : memref<1x128xf32, #tpu.memory_space<vmem>>, vector<1x128xf32>
      %42 = vector.broadcast %41 : vector<1x128xf32> to vector<2x128xf32>
      %43 = arith.mulf %40, %42 : vector<2x128xf32>
      %cst_28 = arith.constant dense<0.000000e+00> : vector<2xf32>
      %44 = vector.multi_reduction <add>, %43, %cst_28 [1] : vector<2x128xf32> to vector<2xf32>
      %45 = vector.shape_cast %44 : vector<2xf32> to vector<2x1xf32>
      %46 = vector.broadcast %27 : f32 to vector<2x1xf32>
      %47 = arith.addf %45, %46 : vector<2x1xf32>
      %48 = arith.negf %47 : vector<2x1xf32>
      %49 = math.exp %48 : vector<2x1xf32>
      %cst_29 = arith.constant 1.000000e+00 : f32
      %50 = vector.broadcast %cst_29 : f32 to vector<2x1xf32>
      %51 = arith.addf %50, %49 : vector<2x1xf32>
      %52 = arith.divf %50, %51 : vector<2x1xf32>
      %53 = vector.shape_cast %52 : vector<2x1xf32> to vector<2x1xf32>
      %54 = vector.broadcast %53 : vector<2x1xf32> to vector<2x128xf32>
      %c0_30 = arith.constant 0 : index
      %c0_31 = arith.constant 0 : index
      %c0_32 = arith.constant 0 : index
      %55 = vector.load %arg9[%c0_30, %c0_31, %c0_32] : memref<1x2x128xf32, #tpu.memory_space<vmem>>, vector<1x2x128xf32>
      %56 = vector.shape_cast %55 : vector<1x2x128xf32> to vector<2x128xf32>
      %57 = vector.shape_cast %54 : vector<2x128xf32> to vector<1x2x128xf32>
      tpu.vector_store %arg9[%c0_30, %c0_31, %c0_32], %57 {strides = array<i32>} : memref<1x2x128xf32, #tpu.memory_space<vmem>>, vector<1x2x128xf32>,
    } else {
    }
    return
  }
  func.func @transform_0(%arg0: i32, %arg1: i32) -> (i32, i32, i32, i32) {
    %c0_i32 = arith.constant 0 : i32
    %c0_i32_0 = arith.constant 0 : i32
    %c0_i32_1 = arith.constant 0 : i32
    return %arg0, %c0_i32, %arg1, %c0_i32_0 : i32, i32, i32, i32
  }
  func.func @transform_1(%arg0: i32, %arg1: i32) -> (i32, i32) {
    %c0_i32 = arith.constant 0 : i32
    %c0_i32_0 = arith.constant 0 : i32
    %c0_i32_1 = arith.constant 0 : i32
    return %c0_i32, %c0_i32_0 : i32, i32
  }
  func.func @transform_2(%arg0: i32, %arg1: i32) -> (i32, i32) {
    %c0_i32 = arith.constant 0 : i32
    %c0_i32_0 = arith.constant 0 : i32
    %c0_i32_1 = arith.constant 0 : i32
    return %c0_i32, %c0_i32_0 : i32, i32
  }
  func.func @transform_3(%arg0: i32, %arg1: i32) -> (i32, i32) {
    %c0_i32 = arith.constant 0 : i32
    %c0_i32_0 = arith.constant 0 : i32
    %c0_i32_1 = arith.constant 0 : i32
    return %c0_i32, %c0_i32_0 : i32, i32
  }
  func.func @transform_4(%arg0: i32, %arg1: i32) -> (i32, i32) {
    %c0_i32 = arith.constant 0 : i32
    %c0_i32_0 = arith.constant 0 : i32
    %c0_i32_1 = arith.constant 0 : i32
    return %c0_i32, %c0_i32_0 : i32, i32
  }
  func.func @transform_5(%arg0: i32, %arg1: i32) -> (i32, i32) {
    %c0_i32 = arith.constant 0 : i32
    %c0_i32_0 = arith.constant 0 : i32
    %c0_i32_1 = arith.constant 0 : i32
    return %c0_i32, %c0_i32_0 : i32, i32
  }
  func.func @transform_6(%arg0: i32, %arg1: i32) -> i32 {
    %c0_i32 = arith.constant 0 : i32
    %c0_i32_0 = arith.constant 0 : i32
    return %c0_i32 : i32
  }
  func.func @transform_7(%arg0: i32, %arg1: i32) -> (i32, i32, i32) {
    %c0_i32 = arith.constant 0 : i32
    %c0_i32_0 = arith.constant 0 : i32
    %c0_i32_1 = arith.constant 0 : i32
    return %arg0, %c0_i32, %c0_i32_0 : i32, i32, i32
  }
}

</mosaic_0001>

<llo_original>
// kernel: tpu_custom_call.1
$region0: #{tpu_custom_call.1}
  #allocation0 [shape = 'u32[]', space=smem, size = 0x4, offset = 0x4, fixed_abs, tag = 'smem constant byte address 0x4 - core index']
  #allocation1 [shape = 'u32[144,128]{1,0:T(1,128)}', space=vmem, size = 0x12000, scoped, tag = 'internal scratch']
  #allocation2 [shape = 'f32[2,128]{1,0:T(2,128)}', space=vmem, size = 0x400, scoped, tag = 'scratch operand']
  %s0 = inlined_call_operand.hbm [shape: f32[1,2,8,16], index: 0, kind: input, shape index: {}]
  %s1 = inlined_call_operand.hbm [shape: bf16[16,128], index: 1, kind: input, shape index: {}]
  %s2 = inlined_call_operand.vmem [shape: f32[1,128], index: 2, kind: input, shape index: {}]
  %s3 = inlined_call_operand.hbm [shape: f32[128,128], index: 3, kind: input, shape index: {}]
  %s4 = inlined_call_operand.vmem [shape: f32[1,128], index: 4, kind: input, shape index: {}]
  %s5 = inlined_call_operand.vmem [shape: f32[1,128], index: 5, kind: input, shape index: {}]
  %s6 = inlined_call_operand.vmem [shape: f32[3], index: 6, kind: input, shape index: {}]
  %s7 = inlined_call_operand.hbm [shape: f32[1,2,128], index: 7, kind: output, shape index: {}]
  %s8 = sld [smem:[#allocation0]]
  $region62: #{tpu_custom_call.1} parent=0
    _
  %s10 = ssub.s32 1, %s8
  %s11 = scalar_select 0, %s10, %s8
  $region1: #{tpu_custom_call.1} parent=0
    #allocation3 [shape = 'u8[8192]{0}', space=vmem, size = 0x2000, scoped, tag = 'input window, operand 0, single buffered']
    #allocation4 [shape = 's32[1]{0}', space=sflag, size = 0x4, scoped, tag = 'scoped memory for tpu_custom_call.1']
    #allocation5 [shape = 's32[1]{0}', space=sflag, size = 0x4, scoped, tag = 'scoped memory for tpu_custom_call.1']
    #allocation6 [shape = 's32[1]{0}', space=sflag, size = 0x4, scoped, tag = 'scoped memory for tpu_custom_call.1']
    #allocation7 [shape = 'u8[4096]{0}', space=vmem, size = 0x1000, scoped, tag = 'input window, operand 1, single buffered']
    #allocation8 [shape = 's32[1]{0}', space=sflag, size = 0x4, scoped, tag = 'scoped memory for tpu_custom_call.1']
    #allocation9 [shape = 'u8[65536]{0}', space=vmem, size = 0x10000, scoped, tag = 'input window, operand 3, single buffered']
    #allocation10 [shape = 'u8[512]{0}', space=smem, size = 0x200, scoped, tag = 'input window, operand 6, single buffered']
    #allocation11 [shape = 'u8[1024]{0}', space=vmem, size = 0x400, scoped, tag = 'output window, operand 0, single buffered']
    %12 = vsyncpa [#allocation4], 0
    %13 = vsyncpa [#allocation8], 0
    %14 = vsyncpa [#allocation6], 0
    %15 = vsyncpa [#allocation5], 0
    // Predicated region
    $region2: #{tpu_custom_call.1} parent=1 // pred_check
      _
    $region3: #{tpu_custom_call.1} parent=1 // pred_check_branch
      %17 = sbr.rel (0) target = $region5
    $region4: #{tpu_custom_call.1} parent=1 // pred_region
      %s19 = ssub.s32 256, 256
      %20 = vsyncadd [#allocation4], %s19
      %s21 = sshll.u32 [#allocation3], 4
      %s22 = int_to_ptr.vmem [resolvable:$true] %s21
      %27 = dma.hbm_to_vmem [thread:$0]  %s0, 256, %s22, [#allocation4], 128, 128, 8
    $region5: #{tpu_custom_call.1} parent=1 // pred_fallthru
      _
    // Predicated region
    $region6: #{tpu_custom_call.1} parent=1 // pred_check
      _
    $region7: #{tpu_custom_call.1} parent=1 // pred_check_branch
      %29 = sbr.rel (0) target = $region9
    $region8: #{tpu_custom_call.1} parent=1 // pred_region
      %s31 = ssub.s32 128, 128
      %32 = vsyncadd [#allocation8], %s31
      %s33 = sshll.u32 [#allocation7], 4
      %s34 = int_to_ptr.vmem [resolvable:$true] %s33
      %39 = dma.hbm_to_vmem [thread:$0]  %s1, 128, %s34, [#allocation8], 64, 64, 4
    $region9: #{tpu_custom_call.1} parent=1 // pred_fallthru
      _
    // Predicated region
    $region10: #{tpu_custom_call.1} parent=1 // pred_check
      _
    $region11: #{tpu_custom_call.1} parent=1 // pred_check_branch
      %41 = sbr.rel (0) target = $region13
    $region12: #{tpu_custom_call.1} parent=1 // pred_region
      _
    $region13: #{tpu_custom_call.1} parent=1 // pred_fallthru
      _
    // Predicated region
    $region14: #{tpu_custom_call.1} parent=1 // pred_check
      _
    $region15: #{tpu_custom_call.1} parent=1 // pred_check_branch
      %43 = sbr.rel (0) target = $region17
    $region16: #{tpu_custom_call.1} parent=1 // pred_region
      %s45 = ssub.s32 2048, 2048
      %46 = vsyncadd [#allocation8], %s45
      %s47 = sshll.u32 [#allocation9], 4
      %s48 = int_to_ptr.vmem [resolvable:$true] %s47
      %53 = dma.hbm_to_vmem [thread:$0]  %s3, 2048, %s48, [#allocation8], 128, 128, 8
    $region17: #{tpu_custom_call.1} parent=1 // pred_fallthru
      _
    // Predicated region
    $region18: #{tpu_custom_call.1} parent=1 // pred_check
      _
    $region19: #{tpu_custom_call.1} parent=1 // pred_check_branch
      %55 = sbr.rel (0) target = $region21
    $region20: #{tpu_custom_call.1} parent=1 // pred_region
      _
    $region21: #{tpu_custom_call.1} parent=1 // pred_fallthru
      _
    // Predicated region
    $region22: #{tpu_custom_call.1} parent=1 // pred_check
      _
    $region23: #{tpu_custom_call.1} parent=1 // pred_check_branch
      %57 = sbr.rel (0) target = $region25
    $region24: #{tpu_custom_call.1} parent=1 // pred_region
      _
    $region25: #{tpu_custom_call.1} parent=1 // pred_fallthru
      _
    // Predicated region
    $region26: #{tpu_custom_call.1} parent=1 // pred_check
      _
    $region27: #{tpu_custom_call.1} parent=1 // pred_check_branch
      %59 = sbr.rel (0) target = $region29
    $region28: #{tpu_custom_call.1} parent=1 // pred_region
      %s61 = ssub.s32 16, 16
      %62 = vsyncadd [#allocation6], %s61
      %s64 = sshll.u32 %s6, 4
      %s65 = int_to_ptr.vmem [resolvable:$true] %s64
      %67 = dma.vmem_to_smem %s65, 16, [#allocation10], [#allocation6]
    $region29: #{tpu_custom_call.1} parent=1 // pred_fallthru
      _
    // Predicated region
    $region30: #{tpu_custom_call.1} parent=1 // pred_check
      _
    $region31: #{tpu_custom_call.1} parent=1 // pred_check_branch
      %69 = sbr.rel (0) target = $region33
    $region32: #{tpu_custom_call.1} parent=1 // pred_region
      %70 = dma.done [#allocation4], 256
    $region33: #{tpu_custom_call.1} parent=1 // pred_fallthru
      _
    // Predicated region
    $region34: #{tpu_custom_call.1} parent=1 // pred_check
      _
    $region35: #{tpu_custom_call.1} parent=1 // pred_check_branch
      %72 = sbr.rel (0) target = $region37
    $region36: #{tpu_custom_call.1} parent=1 // pred_region
      %73 = dma.done [#allocation8], 128
    $region37: #{tpu_custom_call.1} parent=1 // pred_fallthru
      _
    // Predicated region
    $region38: #{tpu_custom_call.1} parent=1 // pred_check
      _
    $region39: #{tpu_custom_call.1} parent=1 // pred_check_branch
      %75 = sbr.rel (0) target = $region41
    $region40: #{tpu_custom_call.1} parent=1 // pred_region
      %76 = dma.done [#allocation8], 2048
    $region41: #{tpu_custom_call.1} parent=1 // pred_fallthru
      _
    // Predicated region
    $region42: #{tpu_custom_call.1} parent=1 // pred_check
      _
    $region43: #{tpu_custom_call.1} parent=1 // pred_check_branch
      %78 = sbr.rel (0) target = $region45
    $region44: #{tpu_custom_call.1} parent=1 // pred_region
      %79 = dma.done [#allocation6], 16
    $region45: #{tpu_custom_call.1} parent=1 // pred_fallthru
      _
    %80 = sfence
    %p82 = scmp.eq.s32.totalorder 0, 0
    // Predicated region
    $region46: #{tpu_custom_call.1} parent=1 // pred_check
      %p83 = pneg %p82
    $region47: #{tpu_custom_call.1} parent=1 // pred_check_branch
      %85 = sbr.rel (%p83) target = $region49
    $region48: #{tpu_custom_call.1} parent=1 // pred_region
      %86 = vst [vmem:[#allocation2] sm:$0x3] 0.0
    $region49: #{tpu_custom_call.1} parent=1 // pred_fallthru
      _
    %s87 = sld [smem:[#allocation10]]
    %v88 = vld [vmem:[#allocation3] sm:$0xff]
    %v89 = vld [vmem:[#allocation3 + $0x8] sm:$0xff]
    %v90 = vpack.c.bf16 %v89, %v88
    %v91 = vld [vmem:[#allocation7] sm:$0xf]
    %v92 = vld [vmem:[#allocation7 + $0x4] sm:$0xf]
    %v93 = vld [vmem:[%s2] sm:$0x1]
    %v95 = vlaneseq
    %v96 = vshrl.u32 %v95, 7
    %v97 = vsub.s32 0, %v96
    %v98 = vrot.slane %v93, %v97
    %v102 = vunpack.c.l.b16 %v91
    %v103 = vunpack.c.l.b16 %v92
    %v104 = vpack.c.b16 %v103, %v102
    %vm106 = vcmask 130048
    %v108 = vsel %vm106, %v90, 0
    %110 = vmatprep.subr.bf16.mxu0 0
    %111 = vmatpush1.bf16.msra.mxu0 0
    %112 = vmatprep.subr.bf16.mxu0 0
    %113 = vmatpush1.bf16.msra.mxu0 0
    %114 = vmatprep.subr.bf16.mxu0 0
    %115 = vmatpush1.bf16.msra.mxu0 0
    %116 = vmatprep.subr.bf16.mxu0 0
    %117 = vmatpush1.bf16.msra.mxu0 0
    %118 = vmatprep.subr.bf16.mxu0 0
    %119 = vmatpush1.bf16.msra.mxu0 0
    %120 = vmatprep.subr.bf16.mxu0 0
    %121 = vmatpush1.bf16.msra.mxu0 0
    %122 = vmatprep.subr.bf16.mxu0 0
    %123 = vmatpush1.bf16.msra.mxu0 0
    %124 = vmatprep.subr.bf16.mxu0 0
    %125 = vmatpush1.bf16.msra.mxu0 %v104
    %126 = vmatprep.subr.bf16.mxu0 0
    %127 = vmatpush2.bf16.msra.mxu0 0
    %128 = vmatprep.subr.bf16.mxu0 0
    %129 = vmatpush2.bf16.msra.mxu0 0
    %130 = vmatprep.subr.bf16.mxu0 0
    %131 = vmatpush2.bf16.msra.mxu0 0
    %132 = vmatprep.subr.bf16.mxu0 0
    %133 = vmatpush2.bf16.msra.mxu0 0
    %134 = vmatprep.subr.bf16.mxu0 0
    %135 = vmatpush2.bf16.msra.mxu0 0
    %136 = vmatprep.subr.bf16.mxu0 0
    %137 = vmatpush2.bf16.msra.mxu0 0
    %138 = vmatprep.subr.bf16.mxu0 0
    %139 = vmatpush2.bf16.msra.mxu0 0
    %140 = vmatprep.subr.bf16.mxu0 0
    %141 = vmatpush2.bf16.msra.mxu0 0
    %142 = vmatprep.mubr.bf16.mxu0 0
    %143 = vmatmul.mubr.bf16.gmra.mxu0 %v108
    %v144 = vpop.f32.mrf.mxu0
    %v145 = vadd.f32 %v98, %v144
    %v146 = vpop.f32.mrf.mxu0
    %v147 = vpop.f32.mrf.mxu0
    %v148 = vadd.f32 %v98, %v147
    %v149 = vpop.f32.mrf.mxu0
    %150 = vdwg.mxu0
    %vm151 = vcmp.gt.f32.partialorder %v145, 0.0
    %vm152 = vcmp.gt.f32.partialorder %v148, 0.0
    %v153 = vstv %s87
    %v154 = vmul.f32 %v153, %v145
    %v155 = vmul.f32 %v153, %v148
    %v156 = vsel %vm151, %v145, %v154
    %v157 = vsel %vm152, %v148, %v155
    %v158 = vld [vmem:[#allocation2] sm:$0x3]
    %v159 = vrot.slane %v156, 4
    %v160 = vadd.f32 %v156, %v159
    %v161 = vrot.slane %v160, 2
    %v162 = vadd.f32 %v160, %v161
    %v163 = vrot.slane %v162, 1
    %v164 = vadd.f32 %v162, %v163
    %v165 = vrot.slane %v157, 4
    %v166 = vadd.f32 %v157, %v165
    %v167 = vrot.slane %v166, 2
    %v168 = vadd.f32 %v166, %v167
    %v169 = vrot.slane %v168, 1
    %v170 = vadd.f32 %v168, %v169
    %vm173 = vcmask 1041409
    %v174 = vsel %vm173, %v170, %v164
    %v176 = vadd.f32 %v158, %v174
    %177 = vst [vmem:[#allocation2] sm:$0x3] %v176
    // Predicated region
    $region50: #{tpu_custom_call.1} parent=1 // pred_check
      %p178 = pneg %p82
    $region51: #{tpu_custom_call.1} parent=1 // pred_check_branch
      %180 = sbr.rel (%p178) target = $region53
    $region52: #{tpu_custom_call.1} parent=1 // pred_region
      %s181 = sld [smem:[#allocation10 + $0x1]]
      %s182 = sld [smem:[#allocation10 + $0x2]]
      %v183 = vld [vmem:[#allocation2] sm:$0x3]
      %v184 = vmul.f32 %v183, 0.125
      %v185 = vld [vmem:[#allocation9] sm:$0xff]
      %v186 = vld [vmem:[#allocation9 + $0x8] sm:$0xff]
      %v187 = vld [vmem:[#allocation9 + $0x10] sm:$0xff]
      %v188 = vld [vmem:[#allocation9 + $0x18] sm:$0xff]
      %v189 = vld [vmem:[#allocation9 + $0x20] sm:$0xff]
      %v190 = vld [vmem:[#allocation9 + $0x28] sm:$0xff]
      %v191 = vld [vmem:[#allocation9 + $0x30] sm:$0xff]
      %v192 = vld [vmem:[#allocation9 + $0x38] sm:$0xff]
      %v193 = vld [vmem:[#allocation9 + $0x40] sm:$0xff]
      %v194 = vld [vmem:[#allocation9 + $0x48] sm:$0xff]
      %v195 = vld [vmem:[#allocation9 + $0x50] sm:$0xff]
      %v196 = vld [vmem:[#allocation9 + $0x58] sm:$0xff]
      %v197 = vld [vmem:[#allocation9 + $0x60] sm:$0xff]
      %v198 = vld [vmem:[#allocation9 + $0x68] sm:$0xff]
      %v199 = vld [vmem:[#allocation9 + $0x70] sm:$0xff]
      %v200 = vld [vmem:[#allocation9 + $0x78] sm:$0xff]
      %v201 = vld [vmem:[%s4] sm:$0x1]
      %v203 = vlaneseq
      %v204 = vshrl.u32 %v203, 7
      %v205 = vsub.s32 0, %v204
      %v206 = vrot.slane %v201, %v205
      %208 = vmatprep.subr.mxu0 0.0
      %209 = vmatpush1.msra.mxu0 %v200
      %210 = vmatprep.subr.mxu0 0.0
      %211 = vmatpush1.msra.mxu0 %v199
      %212 = vmatprep.subr.mxu0 0.0
      %213 = vmatpush1.msra.mxu0 %v198
      %214 = vmatprep.subr.mxu0 0.0
      %215 = vmatpush1.msra.mxu0 %v197
      %216 = vmatprep.subr.mxu0 0.0
      %217 = vmatpush1.msra.mxu0 %v196
      %218 = vmatprep.subr.mxu0 0.0
      %219 = vmatpush1.msra.mxu0 %v195
      %220 = vmatprep.subr.mxu0 0.0
      %221 = vmatpush1.msra.mxu0 %v194
      %222 = vmatprep.subr.mxu0 0.0
      %223 = vmatpush1.msra.mxu0 %v193
      %224 = vmatprep.subr.mxu0 0.0
      %225 = vmatpush1.msra.mxu0 %v192
      %226 = vmatprep.subr.mxu0 0.0
      %227 = vmatpush1.msra.mxu0 %v191
      %228 = vmatprep.subr.mxu0 0.0
      %229 = vmatpush1.msra.mxu0 %v190
      %230 = vmatprep.subr.mxu0 0.0
      %231 = vmatpush1.msra.mxu0 %v189
      %232 = vmatprep.subr.mxu0 0.0
      %233 = vmatpush1.msra.mxu0 %v188
      %234 = vmatprep.subr.mxu0 0.0
      %235 = vmatpush1.msra.mxu0 %v187
      %236 = vmatprep.subr.mxu0 0.0
      %237 = vmatpush1.msra.mxu0 %v186
      %238 = vmatprep.subr.mxu0 0.0
      %239 = vmatpush1.msra.mxu0 %v185
      %240 = vmatprep.subr.mxu0 0.0
      %241 = vmatpush2.msra.mxu0 0.0
      %242 = vmatprep.subr.mxu0 0.0
      %243 = vmatpush2.msra.mxu0 0.0
      %244 = vmatprep.subr.mxu0 0.0
      %245 = vmatpush2.msra.mxu0 0.0
      %246 = vmatprep.subr.mxu0 0.0
      %247 = vmatpush2.msra.mxu0 0.0
      %248 = vmatprep.subr.mxu0 0.0
      %249 = vmatpush2.msra.mxu0 0.0
      %250 = vmatprep.subr.mxu0 0.0
      %251 = vmatpush2.msra.mxu0 0.0
      %252 = vmatprep.subr.mxu0 0.0
      %253 = vmatpush2.msra.mxu0 0.0
      %254 = vmatprep.subr.mxu0 0.0
      %255 = vmatpush2.msra.mxu0 0.0
      %256 = vmatprep.subr.mxu0 0.0
      %257 = vmatpush2.msra.mxu0 0.0
      %258 = vmatprep.subr.mxu0 0.0
      %259 = vmatpush2.msra.mxu0 0.0
      %260 = vmatprep.subr.mxu0 0.0
      %261 = vmatpush2.msra.mxu0 0.0
      %262 = vmatprep.subr.mxu0 0.0
      %263 = vmatpush2.msra.mxu0 0.0
      %264 = vmatprep.subr.mxu0 0.0
      %265 = vmatpush2.msra.mxu0 0.0
      %266 = vmatprep.subr.mxu0 0.0
      %267 = vmatpush2.msra.mxu0 0.0
      %268 = vmatprep.subr.mxu0 0.0
      %269 = vmatpush2.msra.mxu0 0.0
      %270 = vmatprep.subr.mxu0 0.0
      %271 = vmatpush2.msra.mxu0 0.0
      %272 = vmatprep.mubr.f32.mxu0 0.0
      %273 = vmatmul.mubr.f32.gmra.mxu0 %v184
      %v274 = vpop.f32.mrf.mxu0
      %v275 = vadd.f32 %v206, %v274
      %v276 = vpop.f32.mrf.mxu0
      %277 = vdwg.mxu0
      %vm278 = vcmp.gt.f32.partialorder %v275, 0.0
      %v279 = vstv %s181
      %v280 = vmul.f32 %v279, %v275
      %v281 = vsel %vm278, %v275, %v280
      %v282 = vld [vmem:[%s5] sm:$0x1]
      %v284 = vlaneseq
      %v285 = vshrl.u32 %v284, 7
      %v286 = vsub.s32 0, %v285
      %v287 = vrot.slane %v282, %v286
      %v289 = vmul.f32 %v281, %v287
      %vm290 = vcmask 1041408
      %v291 = vsel %vm290, %v289, 0.0
      %292 = vadd.xlane.f32.xlu0 %v291
      %v293 = vpop.xlane.xlu0 %292
      %v294 = vstv %s182
      %v295 = vadd.f32 %v293, %v294
      %v296 = vxor.u32 %v295, 2147483648
      %v297 = vmul.f32 %v296, 1.442695
      %v298 = vpow.pop %v297
      %v299 = vadd.f32 %v298, 1.0
      %v300 = vrcp.pop %v299
      %v301 = vmul.f32 1.0, %v300
      %302 = vst [vmem:[#allocation11] sm:$0x3] %v301
    $region53: #{tpu_custom_call.1} parent=1 // pred_fallthru
      _
    // Predicated region
    $region54: #{tpu_custom_call.1} parent=1 // pred_check
      _
    $region55: #{tpu_custom_call.1} parent=1 // pred_check_branch
      %304 = sbr.rel (0) target = $region57
    $region56: #{tpu_custom_call.1} parent=1 // pred_region
      %s306 = ssub.s32 32, 32
      %307 = vsyncadd [#allocation5], %s306
      %s309 = sshll.u32 [#allocation11], 4
      %s310 = int_to_ptr.vmem [resolvable:$true] %s309
      %312 = dma.vmem_to_hbm [thread:$0]  %s310, 32, %s7, [#allocation5]
    $region57: #{tpu_custom_call.1} parent=1 // pred_fallthru
      _
    // Predicated region
    $region58: #{tpu_custom_call.1} parent=1 // pred_check
      _
    $region59: #{tpu_custom_call.1} parent=1 // pred_check_branch
      %314 = sbr.rel (0) target = $region61
    $region60: #{tpu_custom_call.1} parent=1 // pred_region
      %315 = dma.done [#allocation5], 32
    $region61: #{tpu_custom_call.1} parent=1 // pred_fallthru
      _
    %316 = vsyncpa [#allocation4], 1
    %317 = vsyncpa [#allocation8], 1
    %318 = vsyncpa [#allocation5], 1
    %319 = vsyncpa [#allocation6], 1

</llo_original>
